<compile_context>
chip_gen: v6e
topology: v6e:2x2x1
jax: 0.10.0
libtpu: 0.0.40
codegen_flags: <defaults>
</compile_context>

<pallas_src>
import functools
from typing import NamedTuple

import jax
import jax.numpy as jnp
from jax.experimental import pallas as pl
from jax.experimental.pallas import tpu as pltpu


# ---------------------------------------------------------------------------
# Tiling helpers (all trace-time Python on static shapes).
# ---------------------------------------------------------------------------
def _pick_tile(dim, target, align):
    """Largest multiple of `align` that divides `dim` and is <= target.

    Falls back to the full dimension (always a legal block) only if no such
    aligned divisor exists.
    """
    t = min(dim, target)
    t -= t % align
    while t >= align:
        if dim % t == 0:
            return t
        t -= align
    # TODO(synk): pad `dim` to a tile multiple in the wrapper instead of a
    # full-dim fallback for pathological (prime-ish) sizes.
    return dim


def _shrink_tile(dim, cur, align):
    """Next smaller aligned divisor of `dim` below `cur` (or `cur` if none)."""
    if cur <= align:
        return cur
    nxt = _pick_tile(dim, cur // 2, align)
    return nxt if nxt < cur else cur


def _vmem_limit_bytes():
    """Generation-aware VMEM budget: ~3/4 of physical, capped at 100 MiB."""
    cap = 64 * 1024 * 1024                       # conservative (v7x) fallback
    try:
        cap = int(pltpu.get_tpu_info().vmem_capacity_bytes)
    except Exception:
        pass
    return min(cap * 3 // 4, 100 * 1024 * 1024)  # ~96 MiB on v5e/v6e, ~48 MiB v7x


def _fit_encode_tiles(N, D, H, tN, tD, tH, act_isz, w_isz, hid_isz, budget):
    """Shrink tD, then tH, then tN until the double-buffered blocks fit."""
    def vmem(tn, td, th):
        return (2 * tn * td * act_isz            # activation blocks
                + 2 * td * th * w_isz            # encoder weight blocks
                + 2 * tn * th * hid_isz          # hidden output blocks
                + 2 * th * 4                     # bias blocks (f32)
                + tn * th * 4)                   # f32 accumulator scratch
    while vmem(tN, tD, tH) > budget:
        nd = _shrink_tile(D, tD, 128)
        if nd < tD:
            tD = nd
            continue
        nh = _shrink_tile(H, tH, 128)
        if nh < tH:
            tH = nh
            continue
        nn = _shrink_tile(N, tN, 8)
        if nn < tN:
            tN = nn
            continue
        break
    return tN, tD, tH


def _fit_decode_tiles(N, H, D, tN, tK, hid_isz, w_isz, out_isz, use_acc, budget):
    """Shrink tK before tN (keeps the weight-reuse factor 2*tN flops/byte)."""
    def vmem(tn, tk):
        b = (2 * tn * tk * hid_isz               # hidden blocks
             + 2 * tk * D * w_isz                # decoder weight blocks
             + 2 * tn * D * out_isz              # output blocks (resident)
             + 2 * D * 4)                        # bias blocks (f32)
        if use_acc:
            b += tn * D * 4                      # f32 accumulator scratch
        return b
    while vmem(tN, tK) > budget:
        nk = _shrink_tile(H, tK, 128)
        if nk < tK:
            tK = nk
            continue
        nn = _shrink_tile(N, tN, 8)
        if nn < tN:
            tN = nn
            continue
        break
    return tN, tK


# ---------------------------------------------------------------------------
# Kernels.
# ---------------------------------------------------------------------------
def encode_kernel(act_ref, encw_ref, encb_ref, hid_ref, acc_ref):
    """hidden = relu(act @ W_enc + b_enc), D-tiled contraction (axis 2)."""
    k = pl.program_id(2)

    @pl.when(k == 0)
    def _():
        acc_ref[...] = jnp.zeros_like(acc_ref)

    acc_ref[...] += jnp.dot(act_ref[...], encw_ref[...],
                            preferred_element_type=jnp.float32)

    @pl.when(k == pl.num_programs(2) - 1)
    def _():
        h = acc_ref[...] + encb_ref[...]          # (1, tH) broadcasts over rows
        hid_ref[...] = jnp.maximum(h, 0.0).astype(hid_ref.dtype)


def decode_kernel_f32(hid_ref, decw_ref, decb_ref, out_ref):
    """out[n-tile, l] = hidden @ W_dec[l] + b_dec[l]; f32 output accumulates
    directly in the resident output block (no scratch)."""
    k = pl.program_id(2)

    @pl.when(k == 0)
    def _():
        out_ref[...] = jnp.zeros_like(out_ref)

    out_ref[...] += jnp.dot(hid_ref[...], decw_ref[...],
                            preferred_element_type=jnp.float32)

    @pl.when(k == pl.num_programs(2) - 1)
    def _():
        out_ref[...] += decb_ref[...]             # (1, D) broadcasts over rows


def decode_kernel_acc(hid_ref, decw_ref, decb_ref, out_ref, acc_ref):
    """Same contraction with an f32 scratch, for non-f32 output dtypes."""
    k = pl.program_id(2)

    @pl.when(k == 0)
    def _():
        acc_ref[...] = jnp.zeros_like(acc_ref)

    acc_ref[...] += jnp.dot(hid_ref[...], decw_ref[...],
                            preferred_element_type=jnp.float32)

    @pl.when(k == pl.num_programs(2) - 1)
    def _():
        out_ref[...] = (acc_ref[...] + decb_ref[...]).astype(out_ref.dtype)


# ---------------------------------------------------------------------------
# Parameter preparation (one-time, outside the jitted forward).
# ---------------------------------------------------------------------------
class CrosscoderParams(NamedTuple):
    encw_DH: jax.Array     # (D, H)   encoder weights, pre-transposed
    encb_1H: jax.Array     # (1, H)   f32
    decw_LHD: jax.Array    # (L, H, D) decoder weights, pre-transposed
    decb_L1D: jax.Array    # (L, 1, D) f32


def prepare_crosscoder_params(enc_weights_HD, enc_bias_H, dec_weights_LDH,
                              dec_bias_LD, *, mxu_dtype=None):
    """One-time weight re-layout + optional cast.

    Call once at parameter-setup time (NOT per forward): the (L,D,H)->(L,H,D)
    transpose of the decoder weights is a full HBM read+write.
    `mxu_dtype=jnp.bfloat16` is recommended on v6e/v7x (halves the dominant
    decoder-weight HBM stream and doubles MXU rate; accumulation stays f32).
    """
    H, D = enc_weights_HD.shape
    L = dec_weights_LDH.shape[0]
    encw_DH = jnp.asarray(enc_weights_HD).T                              # (D, H)
    decw_LHD = jnp.transpose(jnp.asarray(dec_weights_LDH), (0, 2, 1))    # (L, H, D)
    if mxu_dtype is not None:
        encw_DH = encw_DH.astype(mxu_dtype)
        decw_LHD = decw_LHD.astype(mxu_dtype)
    encb_1H = jnp.asarray(enc_bias_H).reshape(1, H).astype(jnp.float32)
    decb_L1D = jnp.asarray(dec_bias_LD).reshape(L, 1, D).astype(jnp.float32)
    return CrosscoderParams(encw_DH, encb_1H, decw_LHD, decb_L1D)


# ---------------------------------------------------------------------------
# Forward pass.
# ---------------------------------------------------------------------------
@functools.partial(jax.jit,
                   static_argnames=("tile_n", "tile_h", "tile_k", "tile_d"))
def crosscoder_forward(activation_ND, params: CrosscoderParams, *,
                       tile_n=512, tile_h=512, tile_k=512, tile_d=512):
    """reconstructed_NLD = relu(act @ We.T + be) @ Wd.T + bd (per layer l)."""
    N, D = activation_ND.shape
    H = params.encw_DH.shape[1]
    L = params.decw_LHD.shape[0]
    out_dtype = activation_ND.dtype

    # Compute dtype follows the prepared weights (bf16 if chosen at prepare
    # time); accumulation is always f32 on the MXU.
    compute_dtype = params.encw_DH.dtype
    act = activation_ND.astype(compute_dtype)
    hidden_dtype = params.decw_LHD.dtype

    vmem_limit = _vmem_limit_bytes()
    budget = int(vmem_limit * 0.8)     # headroom for Mosaic-internal scratch

    act_isz = jnp.dtype(compute_dtype).itemsize
    hid_isz = jnp.dtype(hidden_dtype).itemsize
    out_isz = jnp.dtype(out_dtype).itemsize

    # ---------------------------- encode ------------------------------------
    tN = _pick_tile(N, tile_n, 8)
    tH = _pick_tile(H, tile_h, 128)
    tD = _pick_tile(D, tile_d, 128)
    tN, tD, tH = _fit_encode_tiles(N, D, H, tN, tD, tH,
                                   act_isz, act_isz, hid_isz, budget)

    hidden_NH = pl.pallas_call(
        encode_kernel,
        out_shape=jax.ShapeDtypeStruct((N, H), hidden_dtype),
        grid_spec=pltpu.PrefetchScalarGridSpec(
            num_scalar_prefetch=0,
            grid=(N // tN, H // tH, D // tD),
            in_specs=[
                pl.BlockSpec((tN, tD), lambda n, h, k: (n, k)),   # activations
                pl.BlockSpec((tD, tH), lambda n, h, k: (k, h)),   # enc W (D,H)
                pl.BlockSpec((1, tH), lambda n, h, k: (0, h)),    # enc bias
            ],
            out_specs=pl.BlockSpec((tN, tH), lambda n, h, k: (n, h)),
            scratch_shapes=(pltpu.VMEM((tN, tH), jnp.float32),),
        ),
        compiler_params=pltpu.CompilerParams(
            dimension_semantics=("parallel", "parallel", "arbitrary"),
            vmem_limit_bytes=vmem_limit),
    )(act, params.encw_DH, params.encb_1H)

    # ---------------------------- decode ------------------------------------
    use_acc = out_dtype != jnp.float32
    tNd = _pick_tile(N, tile_n, 8)
    tK = _pick_tile(H, tile_k, 128)
    tNd, tK = _fit_decode_tiles(N, H, D, tNd, tK,
                                hid_isz, hid_isz, out_isz, use_acc, budget)

    # v7x megacore: keep >= 2 blocks of parallel work when possible.
    if (N // tNd) * L < 2:
        smaller = _shrink_tile(N, tNd, 8)
        if smaller < tNd and N // smaller >= 2:
            tNd = smaller

    direct_nld = (D % 128 == 0) or (L == 1)
    if direct_nld:
        # (N, L*D) row-major == (N, L, D): the kernel writes the final layout.
        out_shape = jax.ShapeDtypeStruct((N, L * D), out_dtype)
        out_spec = pl.BlockSpec((tNd, D), lambda n, l, k: (n, l))
    else:
        # Lane-alignment fallback: (L, N, D) slab, transposed afterwards.
        out_shape = jax.ShapeDtypeStruct((L, N, D), out_dtype)
        out_spec = pl.BlockSpec((pl.Squeezed(), tNd, D),
                                lambda n, l, k: (l, n, 0))

    kernel = decode_kernel_acc if use_acc else decode_kernel_f32
    scratch = (pltpu.VMEM((tNd, D), jnp.float32),) if use_acc else ()

    out = pl.pallas_call(
        kernel,
        out_shape=out_shape,
        grid_spec=pltpu.PrefetchScalarGridSpec(
            num_scalar_prefetch=0,
            grid=(N // tNd, L, H // tK),
            in_specs=[
                pl.BlockSpec((tNd, tK), lambda n, l, k: (n, k)),             # hidden
                pl.BlockSpec((pl.Squeezed(), tK, D),
                             lambda n, l, k: (l, k, 0)),                     # dec W
                pl.BlockSpec((pl.Squeezed(), 1, D),
                             lambda n, l, k: (l, 0, 0)),                     # dec bias
            ],
            out_specs=out_spec,
            scratch_shapes=scratch,
        ),
        compiler_params=pltpu.CompilerParams(
            dimension_semantics=("parallel", "parallel", "arbitrary"),
            vmem_limit_bytes=vmem_limit),
    )(hidden_NH, params.decw_LHD, params.decb_L1D)

    if direct_nld:
        return out.reshape(N, L, D)               # free: identical memory layout
    return jnp.transpose(out, (1, 0, 2))


# ---------------------------------------------------------------------------
# Pure-JAX reference (mirrors the PyTorch module exactly).
# ---------------------------------------------------------------------------
def causal_crosscoder_forward_ref(activation_ND, enc_weights_HD, enc_bias_H,
                                  dec_weights_LDH, dec_bias_LD):
    hidden_NH = jnp.einsum('nd,hd->nh', activation_ND, enc_weights_HD)
    hidden_NH = jax.nn.relu(hidden_NH + enc_bias_H)
    recon_NLD = jnp.einsum('nh,ldh->nld', hidden_NH, dec_weights_LDH)
    return recon_NLD + dec_bias_LD[None, :, :]


def _make_inputs(key, N, D, H, L, act_dtype=jnp.float32):
    k_act, k_enc, k_eb, k_dec, k_db = jax.random.split(key, 5)
    activation_ND = jax.random.normal(k_act, (N, D), jnp.float32).astype(act_dtype)
    enc_weights_HD = jax.random.normal(k_enc, (H, D), jnp.float32) / (D ** 0.5)
    enc_bias_H = 0.1 * jax.random.normal(k_eb, (H,), jnp.float32)
    dec_weights_LDH = jax.random.normal(k_dec, (L, D, H), jnp.float32) / (H ** 0.5)
    dec_bias_LD = 0.1 * jax.random.normal(k_db, (L, D), jnp.float32)
    return activation_ND, enc_weights_HD, enc_bias_H, dec_weights_LDH, dec_bias_LD


if __name__ == "__main__":
    key = jax.random.PRNGKey(0)
    k1, k2, k3 = jax.random.split(key, 3)

    # --- test 1: f32, multi-tile grids exercise accumulate / finalize paths --
    N, D, H, L = 48, 256, 512, 3
    act, ew, eb, dw, db = _make_inputs(k1, N, D, H, L)
    params = prepare_crosscoder_params(ew, eb, dw, db)       # one-time layout
    out = crosscoder_forward(act, params, tile_n=16, tile_h=256,
                             tile_k=128, tile_d=128)
    out = jax.block_until_ready(out)
    ref = causal_crosscoder_forward_ref(act, ew, eb, dw, db)
    assert out.shape == (N, L, D)
    assert jnp.allclose(out, ref, atol=1e-2, rtol=1e-2), "f32 multi-tile mismatch"

    # --- test 2: D not a multiple of 128 -> (L, N, D) fallback output path ---
    N, D, H, L = 32, 96, 256, 2
    act, ew, eb, dw, db = _make_inputs(k2, N, D, H, L)
    params = prepare_crosscoder_params(ew, eb, dw, db)
    out = crosscoder_forward(act, params, tile_n=16, tile_h=128,
                             tile_k=128, tile_d=128)
    out = jax.block_until_ready(out)
    ref = causal_crosscoder_forward_ref(act, ew, eb, dw, db)
    assert out.shape == (N, L, D)
    assert jnp.allclose(out, ref, atol=1e-2, rtol=1e-2), "fallback-layout mismatch"

    # --- test 3: bf16 MXU inputs + bf16 output (scratch-accumulator path) ----
    N, D, H, L = 48, 256, 512, 3
    act, ew, eb, dw, db = _make_inputs(k3, N, D, H, L, act_dtype=jnp.bfloat16)
    params = prepare_crosscoder_params(ew, eb, dw, db, mxu_dtype=jnp.bfloat16)
    out = crosscoder_forward(act, params, tile_n=16, tile_h=256,
                             tile_k=128, tile_d=128)
    out = jax.block_until_ready(out)
    ref = causal_crosscoder_forward_ref(act.astype(jnp.float32), ew, eb, dw, db)
    assert out.shape == (N, L, D)
    assert out.dtype == jnp.bfloat16
    assert jnp.allclose(out.astype(jnp.float32), ref, atol=1e-1, rtol=1e-1), \
        "bf16 path mismatch"

    # TODO(synk): forward_train's reconstruction/sparsity losses are trivial
    # reductions; left in plain JAX since only forward() was requested.
    print("KERNEL_OK")
</pallas_src>

<mosaic_0001>
module attributes {stable_mosaic.version = 11 : i64} {
  func.func @decode_kernel_f32(%arg0: i32, %arg1: i32, %arg2: i32, %arg3: memref<16x128xf32, #tpu.memory_space<vmem>>, %arg4: memref<1x128x256xf32, #tpu.memory_space<vmem>>, %arg5: memref<1x1x256xf32, #tpu.memory_space<vmem>>, %arg6: memref<16x256xf32, #tpu.memory_space<vmem>>) attributes {dimension_semantics = [#tpu.dimension_semantics<parallel>, #tpu.dimension_semantics<parallel>, #tpu.dimension_semantics<arbitrary>], iteration_bounds = array<i64: 3, 3, 4>, scalar_prefetch = 0 : i64, scratch_operands = 0 : i64, tpu.core_type = #tpu.core_type<tc>, window_params = [{transform_indices = @transform_0, window_bounds = array<i64: 16, 128>}, {transform_indices = @transform_1, window_bounds = array<i64: 1, 128, 256>}, {transform_indices = @transform_2, window_bounds = array<i64: 1, 1, 256>}, {transform_indices = @transform_3, window_bounds = array<i64: 16, 256>}]} {
    %c0_i32 = arith.constant 0 : i32
    %0 = arith.cmpi eq, %arg2, %c0_i32 : i32
    %1 = arith.extui %0 : i1 to i32
    %c0_i32_0 = arith.constant 0 : i32
    %2 = arith.cmpi ne, %1, %c0_i32_0 : i32
    scf.if %2 {
      %cst_10 = arith.constant 0.000000e+00 : f32
      %13 = vector.broadcast %cst_10 : f32 to vector<16x256xf32>
      %c0_11 = arith.constant 0 : index
      %c0_12 = arith.constant 0 : index
      %14 = vector.load %arg6[%c0_11, %c0_12] : memref<16x256xf32, #tpu.memory_space<vmem>>, vector<16x256xf32>
      tpu.vector_store %arg6[%c0_11, %c0_12], %13 {strides = array<i32>} : memref<16x256xf32, #tpu.memory_space<vmem>>, vector<16x256xf32>,
    } else {
    }
    %c0 = arith.constant 0 : index
    %c0_1 = arith.constant 0 : index
    %3 = vector.load %arg6[%c0, %c0_1] : memref<16x256xf32, #tpu.memory_space<vmem>>, vector<16x256xf32>
    %c0_2 = arith.constant 0 : index
    %c0_3 = arith.constant 0 : index
    %4 = vector.load %arg3[%c0_2, %c0_3] : memref<16x128xf32, #tpu.memory_space<vmem>>, vector<16x128xf32>
    %c0_4 = arith.constant 0 : index
    %c0_5 = arith.constant 0 : index
    %c0_6 = arith.constant 0 : index
    %5 = vector.load %arg4[%c0_4, %c0_5, %c0_6] : memref<1x128x256xf32, #tpu.memory_space<vmem>>, vector<1x128x256xf32>
    %6 = vector.shape_cast %5 : vector<1x128x256xf32> to vector<128x256xf32>
    %cst = arith.constant dense<0.000000e+00> : vector<16x256xf32>
    %7 = tpu.matmul %4, %6, %cst {dimension_numbers = #tpu.dot_dimension_numbers<[1], [0], [0], [1], [0, 0, 1, 1], [], []>} : vector<16x128xf32>, vector<128x256xf32>, vector<16x256xf32> -> vector<16x256xf32>
    %8 = arith.addf %3, %7 : vector<16x256xf32>
    %c0_7 = arith.constant 0 : index
    %c0_8 = arith.constant 0 : index
    %9 = vector.load %arg6[%c0_7, %c0_8] : memref<16x256xf32, #tpu.memory_space<vmem>>, vector<16x256xf32>
    tpu.vector_store %arg6[%c0_7, %c0_8], %8 {strides = array<i32>} : memref<16x256xf32, #tpu.memory_space<vmem>>, vector<16x256xf32>,
    %c3_i32 = arith.constant 3 : i32
    %10 = arith.cmpi eq, %arg2, %c3_i32 : i32
    %11 = arith.extui %10 : i1 to i32
    %c0_i32_9 = arith.constant 0 : i32
    %12 = arith.cmpi ne, %11, %c0_i32_9 : i32
    scf.if %12 {
      %c0_10 = arith.constant 0 : index
      %c0_11 = arith.constant 0 : index
      %13 = vector.load %arg6[%c0_10, %c0_11] : memref<16x256xf32, #tpu.memory_space<vmem>>, vector<16x256xf32>
      %c0_12 = arith.constant 0 : index
      %c0_13 = arith.constant 0 : index
      %c0_14 = arith.constant 0 : index
      %14 = vector.load %arg5[%c0_12, %c0_13, %c0_14] : memref<1x1x256xf32, #tpu.memory_space<vmem>>, vector<1x1x256xf32>
      %15 = vector.shape_cast %14 : vector<1x1x256xf32> to vector<1x256xf32>
      %16 = vector.broadcast %15 : vector<1x256xf32> to vector<16x256xf32>
      %17 = arith.addf %13, %16 : vector<16x256xf32>
      %c0_15 = arith.constant 0 : index
      %c0_16 = arith.constant 0 : index
      %18 = vector.load %arg6[%c0_15, %c0_16] : memref<16x256xf32, #tpu.memory_space<vmem>>, vector<16x256xf32>
      tpu.vector_store %arg6[%c0_15, %c0_16], %17 {strides = array<i32>} : memref<16x256xf32, #tpu.memory_space<vmem>>, vector<16x256xf32>,
    } else {
    }
    return
  }
  func.func @transform_0(%arg0: i32, %arg1: i32, %arg2: i32) -> (i32, i32) {
    %c0_i32 = arith.constant 0 : i32
    return %arg0, %arg2 : i32, i32
  }
  func.func @transform_1(%arg0: i32, %arg1: i32, %arg2: i32) -> (i32, i32, i32) {
    %c0_i32 = arith.constant 0 : i32
    %c0_i32_0 = arith.constant 0 : i32
    return %arg1, %arg2, %c0_i32 : i32, i32, i32
  }
  func.func @transform_2(%arg0: i32, %arg1: i32, %arg2: i32) -> (i32, i32, i32) {
    %c0_i32 = arith.constant 0 : i32
    %c0_i32_0 = arith.constant 0 : i32
    %c0_i32_1 = arith.constant 0 : i32
    return %arg1, %c0_i32, %c0_i32_0 : i32, i32, i32
  }
  func.func @transform_3(%arg0: i32, %arg1: i32, %arg2: i32) -> (i32, i32) {
    %c0_i32 = arith.constant 0 : i32
    return %arg0, %arg1 : i32, i32
  }
}

module attributes {stable_mosaic.version = 11 : i64} {
  func.func @encode_kernel(%arg0: i32, %arg1: i32, %arg2: i32, %arg3: memref<16x128xf32, #tpu.memory_space<vmem>>, %arg4: memref<128x256xf32, #tpu.memory_space<vmem>>, %arg5: memref<1x256xf32, #tpu.memory_space<vmem>>, %arg6: memref<16x256xf32, #tpu.memory_space<vmem>>, %arg7: memref<16x256xf32, #tpu.memory_space<vmem>>) attributes {dimension_semantics = [#tpu.dimension_semantics<parallel>, #tpu.dimension_semantics<parallel>, #tpu.dimension_semantics<arbitrary>], iteration_bounds = array<i64: 3, 2, 2>, scalar_prefetch = 0 : i64, scratch_operands = 1 : i64, tpu.core_type = #tpu.core_type<tc>, window_params = [{transform_indices = @transform_0, window_bounds = array<i64: 16, 128>}, {transform_indices = @transform_1, window_bounds = array<i64: 128, 256>}, {transform_indices = @transform_2, window_bounds = array<i64: 1, 256>}, {transform_indices = @transform_3, window_bounds = array<i64: 16, 256>}]} {
    %c0_i32 = arith.constant 0 : i32
    %0 = arith.cmpi eq, %arg2, %c0_i32 : i32
    %1 = arith.extui %0 : i1 to i32
    %c0_i32_0 = arith.constant 0 : i32
    %2 = arith.cmpi ne, %1, %c0_i32_0 : i32
    scf.if %2 {
      %cst_9 = arith.constant 0.000000e+00 : f32
      %12 = vector.broadcast %cst_9 : f32 to vector<16x256xf32>
      %c0_10 = arith.constant 0 : index
      %c0_11 = arith.constant 0 : index
      %13 = vector.load %arg7[%c0_10, %c0_11] : memref<16x256xf32, #tpu.memory_space<vmem>>, vector<16x256xf32>
      tpu.vector_store %arg7[%c0_10, %c0_11], %12 {strides = array<i32>} : memref<16x256xf32, #tpu.memory_space<vmem>>, vector<16x256xf32>,
    } else {
    }
    %c0 = arith.constant 0 : index
    %c0_1 = arith.constant 0 : index
    %3 = vector.load %arg7[%c0, %c0_1] : memref<16x256xf32, #tpu.memory_space<vmem>>, vector<16x256xf32>
    %c0_2 = arith.constant 0 : index
    %c0_3 = arith.constant 0 : index
    %4 = vector.load %arg3[%c0_2, %c0_3] : memref<16x128xf32, #tpu.memory_space<vmem>>, vector<16x128xf32>
    %c0_4 = arith.constant 0 : index
    %c0_5 = arith.constant 0 : index
    %5 = vector.load %arg4[%c0_4, %c0_5] : memref<128x256xf32, #tpu.memory_space<vmem>>, vector<128x256xf32>
    %cst = arith.constant dense<0.000000e+00> : vector<16x256xf32>
    %6 = tpu.matmul %4, %5, %cst {dimension_numbers = #tpu.dot_dimension_numbers<[1], [0], [0], [1], [0, 0, 1, 1], [], []>} : vector<16x128xf32>, vector<128x256xf32>, vector<16x256xf32> -> vector<16x256xf32>
    %7 = arith.addf %3, %6 : vector<16x256xf32>
    %c0_6 = arith.constant 0 : index
    %c0_7 = arith.constant 0 : index
    %8 = vector.load %arg7[%c0_6, %c0_7] : memref<16x256xf32, #tpu.memory_space<vmem>>, vector<16x256xf32>
    tpu.vector_store %arg7[%c0_6, %c0_7], %7 {strides = array<i32>} : memref<16x256xf32, #tpu.memory_space<vmem>>, vector<16x256xf32>,
    %c1_i32 = arith.constant 1 : i32
    %9 = arith.cmpi eq, %arg2, %c1_i32 : i32
    %10 = arith.extui %9 : i1 to i32
    %c0_i32_8 = arith.constant 0 : i32
    %11 = arith.cmpi ne, %10, %c0_i32_8 : i32
    scf.if %11 {
      %c0_9 = arith.constant 0 : index
      %c0_10 = arith.constant 0 : index
      %12 = vector.load %arg7[%c0_9, %c0_10] : memref<16x256xf32, #tpu.memory_space<vmem>>, vector<16x256xf32>
      %c0_11 = arith.constant 0 : index
      %c0_12 = arith.constant 0 : index
      %13 = vector.load %arg5[%c0_11, %c0_12] : memref<1x256xf32, #tpu.memory_space<vmem>>, vector<1x256xf32>
      %14 = vector.broadcast %13 : vector<1x256xf32> to vector<16x256xf32>
      %15 = arith.addf %12, %14 : vector<16x256xf32>
      %cst_13 = arith.constant 0.000000e+00 : f32
      %16 = vector.broadcast %cst_13 : f32 to vector<16x256xf32>
      %17 = arith.maximumf %15, %16 : vector<16x256xf32>
      %c0_14 = arith.constant 0 : index
      %c0_15 = arith.constant 0 : index
      %18 = vector.load %arg6[%c0_14, %c0_15] : memref<16x256xf32, #tpu.memory_space<vmem>>, vector<16x256xf32>
      tpu.vector_store %arg6[%c0_14, %c0_15], %17 {strides = array<i32>} : memref<16x256xf32, #tpu.memory_space<vmem>>, vector<16x256xf32>,
    } else {
    }
    return
  }
  func.func @transform_0(%arg0: i32, %arg1: i32, %arg2: i32) -> (i32, i32) {
    %c0_i32 = arith.constant 0 : i32
    return %arg0, %arg2 : i32, i32
  }
  func.func @transform_1(%arg0: i32, %arg1: i32, %arg2: i32) -> (i32, i32) {
    %c0_i32 = arith.constant 0 : i32
    return %arg2, %arg1 : i32, i32
  }
  func.func @transform_2(%arg0: i32, %arg1: i32, %arg2: i32) -> (i32, i32) {
    %c0_i32 = arith.constant 0 : i32
    %c0_i32_0 = arith.constant 0 : i32
    return %c0_i32, %arg1 : i32, i32
  }
  func.func @transform_3(%arg0: i32, %arg1: i32, %arg2: i32) -> (i32, i32) {
    %c0_i32 = arith.constant 0 : i32
    return %arg0, %arg1 : i32, i32
  }
}

</mosaic_0001>

<llo_original>
// kernel: crosscoder_forward.3
$region0: #{crosscoder_forward.3}
  #allocation0 [shape = 'u32[]', space=smem, size = 0x4, offset = 0x4, fixed_abs, tag = 'smem constant byte address 0x4 - core index']
  #allocation1 [shape = 'u32[144,128]{1,0:T(1,128)}', space=vmem, size = 0x12000, scoped, tag = 'internal scratch']
  %s0 = inlined_call_operand.vmem [shape: f32[48,512], index: 0, kind: input, shape index: {}]
  %s1 = inlined_call_operand.hbm [shape: f32[3,512,256], index: 1, kind: input, shape index: {}]
  %s2 = inlined_call_operand.hbm [shape: f32[3,1,256], index: 2, kind: input, shape index: {}]
  %s3 = inlined_call_operand.vmem [shape: f32[48,768], index: 3, kind: output, shape index: {}]
  %s4 = sld [smem:[#allocation0]]
  $region118: #{crosscoder_forward.3} parent=0
    _
  %s6 = ssub.s32 1, %s4
  %s7 = scalar_select 0, %s6, %s4
  $region1: #{crosscoder_forward.3} parent=0
    #allocation2 [shape = 'u8[16384]{0}', space=vmem, size = 0x4000, scoped, tag = 'input window, operand 0']
    #allocation3 [shape = 'u8[262144]{0}', space=vmem, size = 0x40000, scoped, tag = 'input window, operand 1']
    #allocation4 [shape = 's32[2]{0}', space=sflag, size = 0x8, scoped, tag = 'scoped memory for crosscoder_forward.3']
    #allocation5 [shape = 'u8[2048]{0}', space=vmem, size = 0x800, scoped, tag = 'input window, operand 2']
    #allocation6 [shape = 's32[2]{0}', space=sflag, size = 0x8, scoped, tag = 'scoped memory for crosscoder_forward.3']
    #allocation7 [shape = 'u8[32768]{0}', space=vmem, size = 0x8000, scoped, tag = 'output window, operand 0']
    %8 = vsyncpa [#allocation4], 0
    %s9 = scalar_lea.sflag [#allocation4], 1
    %10 = vsyncpa %s9, 0
    %11 = vsyncpa [#allocation6], 0
    %s12 = scalar_lea.sflag [#allocation6], 1
    %13 = vsyncpa %s12, 0
    loop: start=0, step=1, limit=38
    $region2: #{crosscoder_forward.3} parent=1 // loop_pre_header
      _
    $region3: #{crosscoder_forward.3} parent=1 // loop_header
      %s15 = sphi 0, %s19
      %p16 = scmp.ge.s32.totalorder %s15, 38
      %s22 = sphi 0, %s41
      %s23 = sphi 0, %s37
      %s24 = sphi 0, %s33
      %s25 = sphi 0, %s22
      %s26 = sphi 0, %s23
      %s27 = sphi 0, %s24
      %s28 = sphi 0, %s25
      %s29 = sphi 0, %s26
      %s30 = sphi 0, %s27
      %s46 = sphi 0, %s48
      %s49 = sphi 0, %s46
      %s50 = sphi 0, %s49
      %s66 = sphi 0, %s50
      %s74 = sphi 0, %s76
      %s77 = sphi 0, %s74
      %s78 = sphi 0, %s77
      %s94 = sphi 0, %s78
      %s100 = sphi 0, %s102
      %s103 = sphi 0, %s100
      %s104 = sphi 0, %s103
      %s120 = sphi 0, %s104
      %s128 = sphi 0, %s130
      %s131 = sphi 0, %s128
      %s132 = sphi 0, %s131
      %s148 = sphi 0, %s132
    $region4: #{crosscoder_forward.3} parent=1 // loop_header_branch
      %18 = sbr.rel (%p16) target = $region8
    $region5: #{crosscoder_forward.3} parent=1 // loop_body
      %s20 = ssub.s32 %s15, 1
      %s21 = ssub.s32 %s15, 2
      %s31 = sadd.s32 1, %s24
      %p32 = scmp.ge.s32.totalorder %s31, 4
      %s33 = scalar_select %p32, 0, %s31
      %s34 = sadd.s32 1, %s23
      %s35 = scalar_select %p32, %s34, %s23
      %p36 = scmp.ge.s32.totalorder %s35, 3
      %s37 = scalar_select %p36, 0, %s35
      %s38 = sadd.s32 1, %s22
      %s39 = scalar_select %p36, %s38, %s22
      %p40 = scmp.ge.s32.totalorder %s39, 3
      %s41 = scalar_select %p40, 0, %s39
      %s42 = ssub.s32 %s22, %s41
      %s43 = ssub.s32 %s24, %s33
      %s44 = sor.u32 %s42, %s43
      %p45 = scmp.eq.s32.totalorder %s44, 0
      %s47 = sadd.s32 %s46, 1
      %s48 = scalar_select %p45, %s46, %s47
      %p51 = pneg %p45
      %p52 = scmp.eq.s32.totalorder %s15, 35
      %p53 = por %p51, %p52
      %p54 = scmp.ne.s32.totalorder %s46, %s49
      %p55 = scmp.eq.s32.totalorder %s15, 0
      %p56 = por %p54, %p55
      %p57 = scmp.ne.s32.totalorder %s46, %s49
      %p58 = scmp.eq.s32.totalorder %s20, 35
      %p59 = por %p57, %p58
      %p60 = scmp.ne.s32.totalorder %s49, %s50
      %p61 = scmp.eq.s32.totalorder %s20, 0
      %p62 = por %p60, %p61
      %p63 = scmp.ne.s32.totalorder %s49, %s50
      %p64 = scmp.eq.s32.totalorder %s21, 35
      %p65 = por %p63, %p64
      %p67 = scmp.ne.s32.totalorder %s50, %s66
      %p68 = scmp.eq.s32.totalorder %s21, 0
      %p69 = por %p67, %p68
      %s70 = ssub.s32 %s23, %s37
      %s71 = ssub.s32 %s24, %s33
      %s72 = sor.u32 %s70, %s71
      %p73 = scmp.eq.s32.totalorder %s72, 0
      %s75 = sadd.s32 %s74, 1
      %s76 = scalar_select %p73, %s74, %s75
      %p79 = pneg %p73
      %p80 = scmp.eq.s32.totalorder %s15, 35
      %p81 = por %p79, %p80
      %p82 = scmp.ne.s32.totalorder %s74, %s77
      %p83 = scmp.eq.s32.totalorder %s15, 0
      %p84 = por %p82, %p83
      %p85 = scmp.ne.s32.totalorder %s74, %s77
      %p86 = scmp.eq.s32.totalorder %s20, 35
      %p87 = por %p85, %p86
      %p88 = scmp.ne.s32.totalorder %s77, %s78
      %p89 = scmp.eq.s32.totalorder %s20, 0
      %p90 = por %p88, %p89
      %p91 = scmp.ne.s32.totalorder %s77, %s78
      %p92 = scmp.eq.s32.totalorder %s21, 35
      %p93 = por %p91, %p92
      %p95 = scmp.ne.s32.totalorder %s78, %s94
      %p96 = scmp.eq.s32.totalorder %s21, 0
      %p97 = por %p95, %p96
      %s98 = ssub.s32 %s23, %s37
      %p99 = scmp.eq.s32.totalorder %s98, 0
      %s101 = sadd.s32 %s100, 1
      %s102 = scalar_select %p99, %s100, %s101
      %p105 = pneg %p99
      %p106 = scmp.eq.s32.totalorder %s15, 35
      %p107 = por %p105, %p106
      %p108 = scmp.ne.s32.totalorder %s100, %s103
      %p109 = scmp.eq.s32.totalorder %s15, 0
      %p110 = por %p108, %p109
      %p111 = scmp.ne.s32.totalorder %s100, %s103
      %p112 = scmp.eq.s32.totalorder %s20, 35
      %p113 = por %p111, %p112
      %p114 = scmp.ne.s32.totalorder %s103, %s104
      %p115 = scmp.eq.s32.totalorder %s20, 0
      %p116 = por %p114, %p115
      %p117 = scmp.ne.s32.totalorder %s103, %s104
      %p118 = scmp.eq.s32.totalorder %s21, 35
      %p119 = por %p117, %p118
      %p121 = scmp.ne.s32.totalorder %s104, %s120
      %p122 = scmp.eq.s32.totalorder %s21, 0
      %p123 = por %p121, %p122
      %s124 = ssub.s32 %s22, %s41
      %s125 = ssub.s32 %s23, %s37
      %s126 = sor.u32 %s124, %s125
      %p127 = scmp.eq.s32.totalorder %s126, 0
      %s129 = sadd.s32 %s128, 1
      %s130 = scalar_select %p127, %s128, %s129
      %p133 = pneg %p127
      %p134 = scmp.eq.s32.totalorder %s15, 35
      %p135 = por %p133, %p134
      %p136 = scmp.ne.s32.totalorder %s128, %s131
      %p137 = scmp.eq.s32.totalorder %s15, 0
      %p138 = por %p136, %p137
      %p139 = scmp.ne.s32.totalorder %s128, %s131
      %p140 = scmp.eq.s32.totalorder %s20, 35
      %p141 = por %p139, %p140
      %p142 = scmp.ne.s32.totalorder %s131, %s132
      %p143 = scmp.eq.s32.totalorder %s20, 0
      %p144 = por %p142, %p143
      %p145 = scmp.ne.s32.totalorder %s131, %s132
      %p146 = scmp.eq.s32.totalorder %s21, 35
      %p147 = por %p145, %p146
      %p149 = scmp.ne.s32.totalorder %s132, %s148
      %p150 = scmp.eq.s32.totalorder %s21, 0
      %p151 = por %p149, %p150
      %p152 = scmp.le.s32.totalorder 1, %s15
      %p153 = scmp.lt.s32.totalorder %s15, 37
      %p154 = pnand %p152, %p153
      %p155 = pneg %p154
      // Predicated region
      $region9: #{crosscoder_forward.3} parent=5 // pred_check
        _
      $region10: #{crosscoder_forward.3} parent=5 // pred_check_branch
        %157 = sbr.rel (%p154) target = $region12
      $region11: #{crosscoder_forward.3} parent=5 // pred_region
        %s158 = ssub.s32 %s15, 1
      $region12: #{crosscoder_forward.3} parent=5 // pred_fallthru
        _
      %p159 = scmp.lt.s32.totalorder %s15, 36
      // Predicated region
      $region13: #{crosscoder_forward.3} parent=5 // pred_check
        %p160 = pneg %p159
      $region14: #{crosscoder_forward.3} parent=5 // pred_check_branch
        %162 = sbr.rel (%p160) target = $region16
      $region15: #{crosscoder_forward.3} parent=5 // pred_region
        // Predicated region
        $region17: #{crosscoder_forward.3} parent=15 // pred_check
          %p163 = pneg %p56
        $region18: #{crosscoder_forward.3} parent=15 // pred_check_branch
          %165 = sbr.rel (%p163) target = $region20
        $region19: #{crosscoder_forward.3} parent=15 // pred_region
          %s166 = sand.u32 %s46, 1
          %s167 = sand.u32 %s46, 1
          %s168 = smul.addr %s167, 16
          %s169 = scalar_lea.vmem [#allocation2], %s168
          %s170 = smul.u32 2, %s22
          %s171 = smul.addr %s170, 4
          %s172 = sadd.s32 %s24, %s171
          %s173 = smul.addr %s172, 8
          %s174 = scalar_lea.vmem %s0, %s173
          // Predicated region
          $region21: #{crosscoder_forward.3} parent=19 // pred_check
            _
          $region22: #{crosscoder_forward.3} parent=19 // pred_check_branch
            %176 = sbr.rel (0) target = $region24
          $region23: #{crosscoder_forward.3} parent=19 // pred_region
            // Predicated region
            $region25: #{crosscoder_forward.3} parent=23 // pred_check
              _
            $region26: #{crosscoder_forward.3} parent=23 // pred_check_branch
              %178 = sbr.rel (0) target = $region28
            $region27: #{crosscoder_forward.3} parent=23 // pred_region
              // Predicated region
              $region40: #{crosscoder_forward.3} parent=27 // pred_check
                _
              $region41: #{crosscoder_forward.3} parent=27 // pred_check_branch
                %196 = sbr.rel (0) target = $region43
              $region42: #{crosscoder_forward.3} parent=27 // pred_region
                loop: start=0, step=1, limit=1
                $region44: #{crosscoder_forward.3} parent=42 // loop_pre_header
                  _
                $region45: #{crosscoder_forward.3} parent=42 // loop_header
                  %s198 = sphi 0, %s202
                  %p199 = scmp.ge.s32.totalorder %s198, 1
                  %s203 = sphi %s174, %s174
                  %s204 = sphi %s169, %s169
                $region46: #{crosscoder_forward.3} parent=42 // loop_header_branch
                  %201 = sbr.rel (%p199) target = $region50
                $region47: #{crosscoder_forward.3} parent=42 // loop_body
                  %v205 = vld [vmem:[%s203] sm:$0xff]
                  %206 = vst [vmem:[%s204] sm:$0xff] %v205
                  %v207 = vld [vmem:[%s203 + $0x20] sm:$0xff]
                  %208 = vst [vmem:[%s204 + $0x8] sm:$0xff] %v207
                $region48: #{crosscoder_forward.3} parent=42 // loop_footer
                  %s202 = sadd.s32 1, %s198
                $region49: #{crosscoder_forward.3} parent=42 // loop_footer_branch
                  %197 = sbr.rel target = $region45
                $region50: #{crosscoder_forward.3} parent=42 // loop_exit
                  _
              $region43: #{crosscoder_forward.3} parent=27 // pred_fallthru
                _
              // Predicated region
              $region51: #{crosscoder_forward.3} parent=27 // pred_check
                _
              $region52: #{crosscoder_forward.3} parent=27 // pred_check_branch
                %210 = sbr.rel target = $region54
              $region53: #{crosscoder_forward.3} parent=27 // pred_region
                _
              $region54: #{crosscoder_forward.3} parent=27 // pred_fallthru
                _
            $region28: #{crosscoder_forward.3} parent=23 // pred_fallthru
              _
            // Predicated region
            $region29: #{crosscoder_forward.3} parent=23 // pred_check
              _
            $region30: #{crosscoder_forward.3} parent=23 // pred_check_branch
              %180 = sbr.rel target = $region32
            $region31: #{crosscoder_forward.3} parent=23 // pred_region
              %s182 = ssub.s32 256, 1
              loop: start=0, step=1, limit=1
              $region33: #{crosscoder_forward.3} parent=31 // loop_pre_header
                _
              $region34: #{crosscoder_forward.3} parent=31 // loop_header
                %s184 = sphi 0, %s188
                %p185 = scmp.ge.s32.totalorder %s184, 1
                %s189 = sphi %s174, %s174
                %s190 = sphi %s169, %s169
              $region35: #{crosscoder_forward.3} parent=31 // loop_header_branch
                %187 = sbr.rel (%p185) target = $region39
              $region36: #{crosscoder_forward.3} parent=31 // loop_body
                %v191 = vld [vmem:[%s189] sm:%s182]
                %192 = vst [vmem:[%s190] sm:%s182] %v191
                %v193 = vld [vmem:[%s189 + $0x20] sm:%s182]
                %194 = vst [vmem:[%s190 + $0x8] sm:%s182] %v193
              $region37: #{crosscoder_forward.3} parent=31 // loop_footer
                %s188 = sadd.s32 1, %s184
              $region38: #{crosscoder_forward.3} parent=31 // loop_footer_branch
                %183 = sbr.rel target = $region34
              $region39: #{crosscoder_forward.3} parent=31 // loop_exit
                _
            $region32: #{crosscoder_forward.3} parent=23 // pred_fallthru
              _
          $region24: #{crosscoder_forward.3} parent=19 // pred_fallthru
            _
          %211 = vnop
        $region20: #{crosscoder_forward.3} parent=15 // pred_fallthru
          _
        // Predicated region
        $region55: #{crosscoder_forward.3} parent=15 // pred_check
          %p212 = pneg %p84
        $region56: #{crosscoder_forward.3} parent=15 // pred_check_branch
          %214 = sbr.rel (%p212) target = $region58
        $region57: #{crosscoder_forward.3} parent=15 // pred_region
          %s215 = sand.u32 %s74, 1
          %s216 = scalar_lea.sflag [#allocation4], %s215
          %s217 = sand.u32 %s74, 1
          %s218 = smul.addr %s217, 256
          %s219 = scalar_lea.vmem [#allocation3], %s218
          %s220 = smul.u32 16, %s24
          %s222 = ssub.s32 4096, 4096
          %223 = vsyncadd %s216, %s222
          %s224 = smul.addr %s220, 2
          %s225 = smul.addr %s23, 128
          %s226 = sadd.s32 %s224, %s225
          %s227 = smul.addr %s226, 128
          %s228 = scalar_lea.hbm %s1, %s227
          %s229 = sshll.u32 %s219, 4
          %s230 = int_to_ptr.vmem [resolvable:$true] %s229
          %235 = dma.hbm_to_vmem [thread:$0]  %s228, 4096, %s230, %s216, 256, 256, 16
        $region58: #{crosscoder_forward.3} parent=15 // pred_fallthru
          _
        // Predicated region
        $region59: #{crosscoder_forward.3} parent=15 // pred_check
          %p236 = pneg %p110
        $region60: #{crosscoder_forward.3} parent=15 // pred_check_branch
          %238 = sbr.rel (%p236) target = $region62
        $region61: #{crosscoder_forward.3} parent=15 // pred_region
          %s239 = sand.u32 %s100, 1
          %s240 = scalar_lea.sflag [#allocation6], %s239
          %s241 = sand.u32 %s100, 1
          %s242 = smul.addr %s241, 2
          %s243 = scalar_lea.vmem [#allocation5], %s242
          %s245 = ssub.s32 32, 32
          %246 = vsyncadd %s240, %s245
          %s247 = smul.addr %s23, 2
          %s248 = smul.addr %s247, 16
          %s249 = scalar_lea.hbm %s2, %s248
          %s251 = sshll.u32 %s243, 4
          %s252 = int_to_ptr.vmem [resolvable:$true] %s251
          %254 = dma.hbm_to_vmem [thread:$0]  %s249, 32, %s252, %s240
        $region62: #{crosscoder_forward.3} parent=15 // pred_fallthru
          _
      $region16: #{crosscoder_forward.3} parent=5 // pred_fallthru
        _
      %p255 = scmp.le.s32.totalorder 1, %s15
      %p256 = scmp.lt.s32.totalorder %s15, 37
      %p257 = pnand %p255, %p256
      %p258 = pneg %p257
      // Predicated region
      $region63: #{crosscoder_forward.3} parent=5 // pred_check
        _
      $region64: #{crosscoder_forward.3} parent=5 // pred_check_branch
        %260 = sbr.rel (%p257) target = $region66
      $region65: #{crosscoder_forward.3} parent=5 // pred_region
        %s261 = ssub.s32 %s15, 1
        %s262 = sand.u32 %s49, 1
        %s263 = sand.u32 %s49, 1
        %s264 = smul.addr %s263, 16
        %s265 = scalar_lea.vmem [#allocation2], %s264
        // Predicated region
        $region67: #{crosscoder_forward.3} parent=65 // pred_check
          %p266 = pneg %p62
        $region68: #{crosscoder_forward.3} parent=65 // pred_check_branch
          %268 = sbr.rel (%p266) target = $region70
        $region69: #{crosscoder_forward.3} parent=65 // pred_region
          _
        $region70: #{crosscoder_forward.3} parent=65 // pred_fallthru
          _
        %s269 = sand.u32 %s77, 1
        %s270 = scalar_lea.sflag [#allocation4], %s269
        %s271 = sand.u32 %s77, 1
        %s272 = smul.addr %s271, 256
        %s273 = scalar_lea.vmem [#allocation3], %s272
        // Predicated region
        $region71: #{crosscoder_forward.3} parent=65 // pred_check
          %p274 = pneg %p90
        $region72: #{crosscoder_forward.3} parent=65 // pred_check_branch
          %276 = sbr.rel (%p274) target = $region74
        $region73: #{crosscoder_forward.3} parent=65 // pred_region
          %277 = dma.done %s270, 4096
        $region74: #{crosscoder_forward.3} parent=65 // pred_fallthru
          _
        %s278 = sand.u32 %s103, 1
        %s279 = scalar_lea.sflag [#allocation6], %s278
        %s280 = sand.u32 %s103, 1
        %s281 = smul.addr %s280, 2
        %s282 = scalar_lea.vmem [#allocation5], %s281
        // Predicated region
        $region75: #{crosscoder_forward.3} parent=65 // pred_check
          %p283 = pneg %p116
        $region76: #{crosscoder_forward.3} parent=65 // pred_check_branch
          %285 = sbr.rel (%p283) target = $region78
        $region77: #{crosscoder_forward.3} parent=65 // pred_region
          %286 = dma.done %s279, 32
        $region78: #{crosscoder_forward.3} parent=65 // pred_fallthru
          _
        %s287 = sand.u32 %s49, 1
        %s288 = sand.u32 %s49, 1
        %s289 = smul.addr %s288, 16
        %s290 = scalar_lea.vmem [#allocation2], %s289
        %p291 = pneg %p62
        %p292 = pneg %p59
        %s293 = sand.u32 %s77, 1
        %s294 = scalar_lea.sflag [#allocation4], %s293
        %s295 = sand.u32 %s77, 1
        %s296 = smul.addr %s295, 256
        %s297 = scalar_lea.vmem [#allocation3], %s296
        %p298 = pneg %p90
        %p299 = pneg %p87
        %s300 = sand.u32 %s103, 1
        %s301 = scalar_lea.sflag [#allocation6], %s300
        %s302 = sand.u32 %s103, 1
        %s303 = smul.addr %s302, 2
        %s304 = scalar_lea.vmem [#allocation5], %s303
        %p305 = pneg %p116
        %p306 = pneg %p113
        %p307 = pneg %p144
        %p308 = pneg %p141
        %s309 = sand.u32 %s131, 1
        %s310 = sand.u32 %s131, 1
        %s311 = smul.addr %s310, 32
        %s312 = scalar_lea.vmem [#allocation7], %s311
        %s313 = smul.u32 2, %s25
        %s314 = smul.u32 16, %s27
        %s315 = smul.u32 2, %s25
        %s316 = smul.u32 2, %s26
        %p317 = scmp.eq.s32.totalorder %s27, 0
        // Predicated region
        $region79: #{crosscoder_forward.3} parent=65 // pred_check
          %p318 = pneg %p317
        $region80: #{crosscoder_forward.3} parent=65 // pred_check_branch
          %320 = sbr.rel (%p318) target = $region82
        $region81: #{crosscoder_forward.3} parent=65 // pred_region
          %321 = vst [vmem:[%s312] sm:$0xff] 0.0
          %322 = vst [vmem:[%s312 + $0x8] sm:$0xff] 0.0
          %323 = vst [vmem:[%s312 + $0x10] sm:$0xff] 0.0
          %324 = vst [vmem:[%s312 + $0x18] sm:$0xff] 0.0
        $region82: #{crosscoder_forward.3} parent=65 // pred_fallthru
          _
        %v325 = vld [vmem:[%s312] sm:$0xff]
        %v326 = vld [vmem:[%s312 + $0x8] sm:$0xff]
        %v327 = vld [vmem:[%s312 + $0x10] sm:$0xff]
        %v328 = vld [vmem:[%s312 + $0x18] sm:$0xff]
        %v329 = vld [vmem:[%s265] sm:$0xff]
        %v330 = vld [vmem:[%s265 + $0x8] sm:$0xff]
        %v331 = vld [vmem:[%s273] sm:$0xff]
        %v332 = vld [vmem:[%s273 + $0x8] sm:$0xff]
        %v333 = vld [vmem:[%s273 + $0x10] sm:$0xff]
        %v334 = vld [vmem:[%s273 + $0x18] sm:$0xff]
        %v335 = vld [vmem:[%s273 + $0x20] sm:$0xff]
        %v336 = vld [vmem:[%s273 + $0x28] sm:$0xff]
        %v337 = vld [vmem:[%s273 + $0x30] sm:$0xff]
        %v338 = vld [vmem:[%s273 + $0x38] sm:$0xff]
        %v339 = vld [vmem:[%s273 + $0x40] sm:$0xff]
        %v340 = vld [vmem:[%s273 + $0x48] sm:$0xff]
        %v341 = vld [vmem:[%s273 + $0x50] sm:$0xff]
        %v342 = vld [vmem:[%s273 + $0x58] sm:$0xff]
        %v343 = vld [vmem:[%s273 + $0x60] sm:$0xff]
        %v344 = vld [vmem:[%s273 + $0x68] sm:$0xff]
        %v345 = vld [vmem:[%s273 + $0x70] sm:$0xff]
        %v346 = vld [vmem:[%s273 + $0x78] sm:$0xff]
        %v347 = vld [vmem:[%s273 + $0x80] sm:$0xff]
        %v348 = vld [vmem:[%s273 + $0x88] sm:$0xff]
        %v349 = vld [vmem:[%s273 + $0x90] sm:$0xff]
        %v350 = vld [vmem:[%s273 + $0x98] sm:$0xff]
        %v351 = vld [vmem:[%s273 + $0xa0] sm:$0xff]
        %v352 = vld [vmem:[%s273 + $0xa8] sm:$0xff]
        %v353 = vld [vmem:[%s273 + $0xb0] sm:$0xff]
        %v354 = vld [vmem:[%s273 + $0xb8] sm:$0xff]
        %v355 = vld [vmem:[%s273 + $0xc0] sm:$0xff]
        %v356 = vld [vmem:[%s273 + $0xc8] sm:$0xff]
        %v357 = vld [vmem:[%s273 + $0xd0] sm:$0xff]
        %v358 = vld [vmem:[%s273 + $0xd8] sm:$0xff]
        %v359 = vld [vmem:[%s273 + $0xe0] sm:$0xff]
        %v360 = vld [vmem:[%s273 + $0xe8] sm:$0xff]
        %v361 = vld [vmem:[%s273 + $0xf0] sm:$0xff]
        %v362 = vld [vmem:[%s273 + $0xf8] sm:$0xff]
        %363 = vmatprep.subr.mxu0 %v362
        %364 = vmatpush1.msra.mxu0 %v361
        %365 = vmatprep.subr.mxu0 %v360
        %366 = vmatpush1.msra.mxu0 %v359
        %367 = vmatprep.subr.mxu0 %v358
        %368 = vmatpush1.msra.mxu0 %v357
        %369 = vmatprep.subr.mxu0 %v356
        %370 = vmatpush1.msra.mxu0 %v355
        %371 = vmatprep.subr.mxu0 %v354
        %372 = vmatpush1.msra.mxu0 %v353
        %373 = vmatprep.subr.mxu0 %v352
        %374 = vmatpush1.msra.mxu0 %v351
        %375 = vmatprep.subr.mxu0 %v350
        %376 = vmatpush1.msra.mxu0 %v349
        %377 = vmatprep.subr.mxu0 %v348
        %378 = vmatpush1.msra.mxu0 %v347
        %379 = vmatprep.subr.mxu0 %v346
        %380 = vmatpush1.msra.mxu0 %v345
        %381 = vmatprep.subr.mxu0 %v344
        %382 = vmatpush1.msra.mxu0 %v343
        %383 = vmatprep.subr.mxu0 %v342
        %384 = vmatpush1.msra.mxu0 %v341
        %385 = vmatprep.subr.mxu0 %v340
        %386 = vmatpush1.msra.mxu0 %v339
        %387 = vmatprep.subr.mxu0 %v338
        %388 = vmatpush1.msra.mxu0 %v337
        %389 = vmatprep.subr.mxu0 %v336
        %390 = vmatpush1.msra.mxu0 %v335
        %391 = vmatprep.subr.mxu0 %v334
        %392 = vmatpush1.msra.mxu0 %v333
        %393 = vmatprep.subr.mxu0 %v332
        %394 = vmatpush1.msra.mxu0 %v331
        %395 = vmatprep.subr.mxu0 0.0
        %396 = vmatpush2.msra.mxu0 0.0
        %397 = vmatprep.subr.mxu0 0.0
        %398 = vmatpush2.msra.mxu0 0.0
        %399 = vmatprep.subr.mxu0 0.0
        %400 = vmatpush2.msra.mxu0 0.0
        %401 = vmatprep.subr.mxu0 0.0
        %402 = vmatpush2.msra.mxu0 0.0
        %403 = vmatprep.subr.mxu0 0.0
        %404 = vmatpush2.msra.mxu0 0.0
        %405 = vmatprep.subr.mxu0 0.0
        %406 = vmatpush2.msra.mxu0 0.0
        %407 = vmatprep.subr.mxu0 0.0
        %408 = vmatpush2.msra.mxu0 0.0
        %409 = vmatprep.subr.mxu0 0.0
        %410 = vmatpush2.msra.mxu0 0.0
        %411 = vmatprep.subr.mxu0 0.0
        %412 = vmatpush2.msra.mxu0 0.0
        %413 = vmatprep.subr.mxu0 0.0
        %414 = vmatpush2.msra.mxu0 0.0
        %415 = vmatprep.subr.mxu0 0.0
        %416 = vmatpush2.msra.mxu0 0.0
        %417 = vmatprep.subr.mxu0 0.0
        %418 = vmatpush2.msra.mxu0 0.0
        %419 = vmatprep.subr.mxu0 0.0
        %420 = vmatpush2.msra.mxu0 0.0
        %421 = vmatprep.subr.mxu0 0.0
        %422 = vmatpush2.msra.mxu0 0.0
        %423 = vmatprep.subr.mxu0 0.0
        %424 = vmatpush2.msra.mxu0 0.0
        %425 = vmatprep.subr.mxu0 0.0
        %426 = vmatpush2.msra.mxu0 0.0
        %427 = vmatprep.mubr.f32.mxu0 0.0
        %428 = vmatmul.mubr.f32.gmra.mxu0 %v329
        %v429 = vpop.f32.mrf.mxu0
        %v430 = vadd.f32 0.0, %v429
        %v431 = vpop.f32.mrf.mxu0
        %v432 = vadd.f32 0.0, %v431
        %433 = vmatprep.mubr.f32.mxu0 0.0
        %434 = vmatmul.mubr.f32.gmra.mxu0 %v330
        %v435 = vpop.f32.mrf.mxu0
        %v436 = vadd.f32 0.0, %v435
        %v437 = vpop.f32.mrf.mxu0
        %v438 = vadd.f32 0.0, %v437
        %439 = vdwg.mxu0
        %v440 = vadd.f32 %v325, %v430
        %v441 = vadd.f32 %v326, %v432
        %v442 = vadd.f32 %v327, %v436
        %v443 = vadd.f32 %v328, %v438
        %444 = vst [vmem:[%s312] sm:$0xff] %v440
        %445 = vst [vmem:[%s312 + $0x8] sm:$0xff] %v441
        %446 = vst [vmem:[%s312 + $0x10] sm:$0xff] %v442
        %447 = vst [vmem:[%s312 + $0x18] sm:$0xff] %v443
        %p448 = scmp.eq.s32.totalorder %s27, 3
        // Predicated region
        $region83: #{crosscoder_forward.3} parent=65 // pred_check
          %p449 = pneg %p448
        $region84: #{crosscoder_forward.3} parent=65 // pred_check_branch
          %451 = sbr.rel (%p449) target = $region86
        $region85: #{crosscoder_forward.3} parent=65 // pred_region
          %v452 = vld [vmem:[%s312] sm:$0xff]
          %v453 = vld [vmem:[%s312 + $0x8] sm:$0xff]
          %v454 = vld [vmem:[%s312 + $0x10] sm:$0xff]
          %v455 = vld [vmem:[%s312 + $0x18] sm:$0xff]
          %v456 = vld [vmem:[%s282] sm:$0x3]
          %v458 = vlaneseq
          %v459 = vshrl.u32 %v458, 7
          %v460 = vsub.s32 0, %v459
          %v461 = vrot.slane %v456, %v460
          %v462 = vlaneseq
          %v463 = vshrl.u32 %v462, 7
          %v464 = vsub.s32 1, %v463
          %v465 = vrot.slane %v456, %v464
          %v468 = vadd.f32 %v452, %v461
          %v469 = vadd.f32 %v453, %v465
          %v470 = vadd.f32 %v454, %v461
          %v471 = vadd.f32 %v455, %v465
          %472 = vst [vmem:[%s312] sm:$0xff] %v468
          %473 = vst [vmem:[%s312 + $0x8] sm:$0xff] %v469
          %474 = vst [vmem:[%s312 + $0x10] sm:$0xff] %v470
          %475 = vst [vmem:[%s312 + $0x18] sm:$0xff] %v471
        $region86: #{crosscoder_forward.3} parent=65 // pred_fallthru
          _
        %s476 = sand.u32 %s131, 1
        %s477 = sand.u32 %s131, 1
        %s478 = smul.addr %s477, 32
        %s479 = scalar_lea.vmem [#allocation7], %s478
        // Predicated region
        $region87: #{crosscoder_forward.3} parent=65 // pred_check
          %p480 = pneg %p141
        $region88: #{crosscoder_forward.3} parent=65 // pred_check_branch
          %482 = sbr.rel (%p480) target = $region90
        $region89: #{crosscoder_forward.3} parent=65 // pred_region
          %s483 = smul.u32 2, %s25
          %s484 = smul.u32 2, %s26
          %s485 = smul.addr %s483, 6
          %s486 = sadd.s32 %s484, %s485
          %s487 = smul.addr %s486, 8
          %s488 = scalar_lea.vmem %s3, %s487
          // Predicated region
          $region91: #{crosscoder_forward.3} parent=89 // pred_check
            _
          $region92: #{crosscoder_forward.3} parent=89 // pred_check_branch
            %490 = sbr.rel (0) target = $region94
          $region93: #{crosscoder_forward.3} parent=89 // pred_region
            // Predicated region
            $region95: #{crosscoder_forward.3} parent=93 // pred_check
              _
            $region96: #{crosscoder_forward.3} parent=93 // pred_check_branch
              %492 = sbr.rel (0) target = $region98
            $region97: #{crosscoder_forward.3} parent=93 // pred_region
              loop: start=0, step=1, limit=1
              $region99: #{crosscoder_forward.3} parent=97 // loop_pre_header
                _
              $region100: #{crosscoder_forward.3} parent=97 // loop_header
                %s494 = sphi 0, %s498
                %p495 = scmp.ge.s32.totalorder %s494, 1
                %s499 = sphi %s479, %s479
                %s500 = sphi %s488, %s488
              $region101: #{crosscoder_forward.3} parent=97 // loop_header_branch
                %497 = sbr.rel (%p495) target = $region105
              $region102: #{crosscoder_forward.3} parent=97 // loop_body
                %v501 = vld [vmem:[%s499] sm:$0xff]
                %502 = vst [vmem:[%s500] sm:$0xff] %v501
                %v503 = vld [vmem:[%s499 + $0x8] sm:$0xff]
                %504 = vst [vmem:[%s500 + $0x8] sm:$0xff] %v503
                %v505 = vld [vmem:[%s499 + $0x10] sm:$0xff]
                %506 = vst [vmem:[%s500 + $0x30] sm:$0xff] %v505
                %v507 = vld [vmem:[%s499 + $0x18] sm:$0xff]
                %508 = vst [vmem:[%s500 + $0x38] sm:$0xff] %v507
              $region103: #{crosscoder_forward.3} parent=97 // loop_footer
                %s498 = sadd.s32 1, %s494
              $region104: #{crosscoder_forward.3} parent=97 // loop_footer_branch
                %493 = sbr.rel target = $region100
              $region105: #{crosscoder_forward.3} parent=97 // loop_exit
                _
            $region98: #{crosscoder_forward.3} parent=93 // pred_fallthru
              _
            // Predicated region
            $region106: #{crosscoder_forward.3} parent=93 // pred_check
              _
            $region107: #{crosscoder_forward.3} parent=93 // pred_check_branch
              %510 = sbr.rel target = $region109
            $region108: #{crosscoder_forward.3} parent=93 // pred_region
              _
            $region109: #{crosscoder_forward.3} parent=93 // pred_fallthru
              _
          $region94: #{crosscoder_forward.3} parent=89 // pred_fallthru
            _
          %511 = vnop
        $region90: #{crosscoder_forward.3} parent=65 // pred_fallthru
          _
      $region66: #{crosscoder_forward.3} parent=5 // pred_fallthru
        _
      %p512 = scmp.le.s32.totalorder 2, %s15
      // Predicated region
      $region110: #{crosscoder_forward.3} parent=5 // pred_check
        %p513 = pneg %p512
      $region111: #{crosscoder_forward.3} parent=5 // pred_check_branch
        %515 = sbr.rel (%p513) target = $region113
      $region112: #{crosscoder_forward.3} parent=5 // pred_region
        %s516 = ssub.s32 %s15, 2
        // Predicated region
        $region114: #{crosscoder_forward.3} parent=112 // pred_check
          %p517 = pneg %p147
        $region115: #{crosscoder_forward.3} parent=112 // pred_check_branch
          %519 = sbr.rel (%p517) target = $region117
        $region116: #{crosscoder_forward.3} parent=112 // pred_region
          %s520 = sand.u32 %s132, 1
          %s521 = sand.u32 %s132, 1
          %s522 = smul.addr %s521, 32
          %s523 = scalar_lea.vmem [#allocation7], %s522
        $region117: #{crosscoder_forward.3} parent=112 // pred_fallthru
          _
      $region113: #{crosscoder_forward.3} parent=5 // pred_fallthru
        _
    $region6: #{crosscoder_forward.3} parent=1 // loop_footer
      %s19 = sadd.s32 1, %s15
    $region7: #{crosscoder_forward.3} parent=1 // loop_footer_branch
      %14 = sbr.rel target = $region3
    $region8: #{crosscoder_forward.3} parent=1 // loop_exit
      _
    %524 = vsyncpa [#allocation4], 1
    %s525 = scalar_lea.sflag [#allocation4], 1
    %526 = vsyncpa %s525, 1
    %527 = vsyncpa [#allocation6], 1
    %s528 = scalar_lea.sflag [#allocation6], 1
    %529 = vsyncpa %s528, 1

// kernel: crosscoder_forward.2
$region0: #{crosscoder_forward.2}
  #allocation0 [shape = 'u32[]', space=smem, size = 0x4, offset = 0x4, fixed_abs, tag = 'smem constant byte address 0x4 - core index']
  #allocation1 [shape = 'u32[144,128]{1,0:T(1,128)}', space=vmem, size = 0x12000, scoped, tag = 'internal scratch']
  #allocation2 [shape = 'f32[16,256]{1,0:T(8,128)}', space=vmem, size = 0x4000, scoped, tag = 'scratch operand']
  %s0 = inlined_call_operand.hbm [shape: f32[48,256], index: 0, kind: input, shape index: {}]
  %s1 = inlined_call_operand.hbm [shape: f32[256,512], index: 1, kind: input, shape index: {}]
  %s2 = inlined_call_operand.hbm [shape: f32[1,512], index: 2, kind: input, shape index: {}]
  %s3 = inlined_call_operand.vmem [shape: f32[48,512], index: 3, kind: output, shape index: {}]
  %s4 = sld [smem:[#allocation0]]
  $region84: #{crosscoder_forward.2} parent=0
    _
  %s6 = ssub.s32 1, %s4
  %s7 = scalar_select 0, %s6, %s4
  $region1: #{crosscoder_forward.2} parent=0
    #allocation3 [shape = 'u8[16384]{0}', space=vmem, size = 0x4000, scoped, tag = 'input window, operand 0']
    #allocation4 [shape = 's32[2]{0}', space=sflag, size = 0x8, scoped, tag = 'scoped memory for crosscoder_forward.2']
    #allocation5 [shape = 'u8[262144]{0}', space=vmem, size = 0x40000, scoped, tag = 'input window, operand 1']
    #allocation6 [shape = 's32[2]{0}', space=sflag, size = 0x8, scoped, tag = 'scoped memory for crosscoder_forward.2']
    #allocation7 [shape = 'u8[2048]{0}', space=vmem, size = 0x800, scoped, tag = 'input window, operand 2']
    #allocation8 [shape = 'u8[32768]{0}', space=vmem, size = 0x8000, scoped, tag = 'output window, operand 0']
    %8 = vsyncpa [#allocation4], 0
    %s9 = scalar_lea.sflag [#allocation4], 1
    %10 = vsyncpa %s9, 0
    %11 = vsyncpa [#allocation6], 0
    %s12 = scalar_lea.sflag [#allocation6], 1
    %13 = vsyncpa %s12, 0
    loop: start=0, step=1, limit=14
    $region2: #{crosscoder_forward.2} parent=1 // loop_pre_header
      _
    $region3: #{crosscoder_forward.2} parent=1 // loop_header
      %s15 = sphi 0, %s19
      %p16 = scmp.ge.s32.totalorder %s15, 14
      %s22 = sphi 0, %s41
      %s23 = sphi 0, %s37
      %s24 = sphi 0, %s33
      %s25 = sphi 0, %s22
      %s26 = sphi 0, %s23
      %s27 = sphi 0, %s24
      %s28 = sphi 0, %s25
      %s29 = sphi 0, %s26
      %s30 = sphi 0, %s27
      %s46 = sphi 0, %s48
      %s49 = sphi 0, %s46
      %s50 = sphi 0, %s49
      %s66 = sphi 0, %s50
      %s74 = sphi 0, %s76
      %s77 = sphi 0, %s74
      %s78 = sphi 0, %s77
      %s94 = sphi 0, %s78
      %s100 = sphi 0, %s102
      %s103 = sphi 0, %s100
      %s104 = sphi 0, %s103
      %s120 = sphi 0, %s104
      %s128 = sphi 0, %s130
      %s131 = sphi 0, %s128
      %s132 = sphi 0, %s131
      %s148 = sphi 0, %s132
    $region4: #{crosscoder_forward.2} parent=1 // loop_header_branch
      %18 = sbr.rel (%p16) target = $region8
    $region5: #{crosscoder_forward.2} parent=1 // loop_body
      %s20 = ssub.s32 %s15, 1
      %s21 = ssub.s32 %s15, 2
      %s31 = sadd.s32 1, %s24
      %p32 = scmp.ge.s32.totalorder %s31, 2
      %s33 = scalar_select %p32, 0, %s31
      %s34 = sadd.s32 1, %s23
      %s35 = scalar_select %p32, %s34, %s23
      %p36 = scmp.ge.s32.totalorder %s35, 2
      %s37 = scalar_select %p36, 0, %s35
      %s38 = sadd.s32 1, %s22
      %s39 = scalar_select %p36, %s38, %s22
      %p40 = scmp.ge.s32.totalorder %s39, 3
      %s41 = scalar_select %p40, 0, %s39
      %s42 = ssub.s32 %s22, %s41
      %s43 = ssub.s32 %s24, %s33
      %s44 = sor.u32 %s42, %s43
      %p45 = scmp.eq.s32.totalorder %s44, 0
      %s47 = sadd.s32 %s46, 1
      %s48 = scalar_select %p45, %s46, %s47
      %p51 = pneg %p45
      %p52 = scmp.eq.s32.totalorder %s15, 11
      %p53 = por %p51, %p52
      %p54 = scmp.ne.s32.totalorder %s46, %s49
      %p55 = scmp.eq.s32.totalorder %s15, 0
      %p56 = por %p54, %p55
      %p57 = scmp.ne.s32.totalorder %s46, %s49
      %p58 = scmp.eq.s32.totalorder %s20, 11
      %p59 = por %p57, %p58
      %p60 = scmp.ne.s32.totalorder %s49, %s50
      %p61 = scmp.eq.s32.totalorder %s20, 0
      %p62 = por %p60, %p61
      %p63 = scmp.ne.s32.totalorder %s49, %s50
      %p64 = scmp.eq.s32.totalorder %s21, 11
      %p65 = por %p63, %p64
      %p67 = scmp.ne.s32.totalorder %s50, %s66
      %p68 = scmp.eq.s32.totalorder %s21, 0
      %p69 = por %p67, %p68
      %s70 = ssub.s32 %s24, %s33
      %s71 = ssub.s32 %s23, %s37
      %s72 = sor.u32 %s70, %s71
      %p73 = scmp.eq.s32.totalorder %s72, 0
      %s75 = sadd.s32 %s74, 1
      %s76 = scalar_select %p73, %s74, %s75
      %p79 = pneg %p73
      %p80 = scmp.eq.s32.totalorder %s15, 11
      %p81 = por %p79, %p80
      %p82 = scmp.ne.s32.totalorder %s74, %s77
      %p83 = scmp.eq.s32.totalorder %s15, 0
      %p84 = por %p82, %p83
      %p85 = scmp.ne.s32.totalorder %s74, %s77
      %p86 = scmp.eq.s32.totalorder %s20, 11
      %p87 = por %p85, %p86
      %p88 = scmp.ne.s32.totalorder %s77, %s78
      %p89 = scmp.eq.s32.totalorder %s20, 0
      %p90 = por %p88, %p89
      %p91 = scmp.ne.s32.totalorder %s77, %s78
      %p92 = scmp.eq.s32.totalorder %s21, 11
      %p93 = por %p91, %p92
      %p95 = scmp.ne.s32.totalorder %s78, %s94
      %p96 = scmp.eq.s32.totalorder %s21, 0
      %p97 = por %p95, %p96
      %s98 = ssub.s32 %s23, %s37
      %p99 = scmp.eq.s32.totalorder %s98, 0
      %s101 = sadd.s32 %s100, 1
      %s102 = scalar_select %p99, %s100, %s101
      %p105 = pneg %p99
      %p106 = scmp.eq.s32.totalorder %s15, 11
      %p107 = por %p105, %p106
      %p108 = scmp.ne.s32.totalorder %s100, %s103
      %p109 = scmp.eq.s32.totalorder %s15, 0
      %p110 = por %p108, %p109
      %p111 = scmp.ne.s32.totalorder %s100, %s103
      %p112 = scmp.eq.s32.totalorder %s20, 11
      %p113 = por %p111, %p112
      %p114 = scmp.ne.s32.totalorder %s103, %s104
      %p115 = scmp.eq.s32.totalorder %s20, 0
      %p116 = por %p114, %p115
      %p117 = scmp.ne.s32.totalorder %s103, %s104
      %p118 = scmp.eq.s32.totalorder %s21, 11
      %p119 = por %p117, %p118
      %p121 = scmp.ne.s32.totalorder %s104, %s120
      %p122 = scmp.eq.s32.totalorder %s21, 0
      %p123 = por %p121, %p122
      %s124 = ssub.s32 %s22, %s41
      %s125 = ssub.s32 %s23, %s37
      %s126 = sor.u32 %s124, %s125
      %p127 = scmp.eq.s32.totalorder %s126, 0
      %s129 = sadd.s32 %s128, 1
      %s130 = scalar_select %p127, %s128, %s129
      %p133 = pneg %p127
      %p134 = scmp.eq.s32.totalorder %s15, 11
      %p135 = por %p133, %p134
      %p136 = scmp.ne.s32.totalorder %s128, %s131
      %p137 = scmp.eq.s32.totalorder %s15, 0
      %p138 = por %p136, %p137
      %p139 = scmp.ne.s32.totalorder %s128, %s131
      %p140 = scmp.eq.s32.totalorder %s20, 11
      %p141 = por %p139, %p140
      %p142 = scmp.ne.s32.totalorder %s131, %s132
      %p143 = scmp.eq.s32.totalorder %s20, 0
      %p144 = por %p142, %p143
      %p145 = scmp.ne.s32.totalorder %s131, %s132
      %p146 = scmp.eq.s32.totalorder %s21, 11
      %p147 = por %p145, %p146
      %p149 = scmp.ne.s32.totalorder %s132, %s148
      %p150 = scmp.eq.s32.totalorder %s21, 0
      %p151 = por %p149, %p150
      %p152 = scmp.le.s32.totalorder 1, %s15
      %p153 = scmp.lt.s32.totalorder %s15, 13
      %p154 = pnand %p152, %p153
      %p155 = pneg %p154
      // Predicated region
      $region9: #{crosscoder_forward.2} parent=5 // pred_check
        _
      $region10: #{crosscoder_forward.2} parent=5 // pred_check_branch
        %157 = sbr.rel (%p154) target = $region12
      $region11: #{crosscoder_forward.2} parent=5 // pred_region
        %s158 = ssub.s32 %s15, 1
      $region12: #{crosscoder_forward.2} parent=5 // pred_fallthru
        _
      %p159 = scmp.lt.s32.totalorder %s15, 12
      // Predicated region
      $region13: #{crosscoder_forward.2} parent=5 // pred_check
        %p160 = pneg %p159
      $region14: #{crosscoder_forward.2} parent=5 // pred_check_branch
        %162 = sbr.rel (%p160) target = $region16
      $region15: #{crosscoder_forward.2} parent=5 // pred_region
        // Predicated region
        $region17: #{crosscoder_forward.2} parent=15 // pred_check
          %p163 = pneg %p56
        $region18: #{crosscoder_forward.2} parent=15 // pred_check_branch
          %165 = sbr.rel (%p163) target = $region20
        $region19: #{crosscoder_forward.2} parent=15 // pred_region
          %s166 = sand.u32 %s46, 1
          %s167 = scalar_lea.sflag [#allocation4], %s166
          %s168 = sand.u32 %s46, 1
          %s169 = smul.addr %s168, 16
          %s170 = scalar_lea.vmem [#allocation3], %s169
          %s171 = smul.u32 2, %s22
          %s173 = ssub.s32 256, 256
          %174 = vsyncadd %s167, %s173
          %s175 = smul.addr %s171, 2
          %s176 = sadd.s32 %s24, %s175
          %s177 = smul.addr %s176, 128
          %s178 = scalar_lea.hbm %s0, %s177
          %s179 = sshll.u32 %s170, 4
          %s180 = int_to_ptr.vmem [resolvable:$true] %s179
          %185 = dma.hbm_to_vmem [thread:$0]  %s178, 256, %s180, %s167, 256, 128, 8
        $region20: #{crosscoder_forward.2} parent=15 // pred_fallthru
          _
        // Predicated region
        $region21: #{crosscoder_forward.2} parent=15 // pred_check
          %p186 = pneg %p84
        $region22: #{crosscoder_forward.2} parent=15 // pred_check_branch
          %188 = sbr.rel (%p186) target = $region24
        $region23: #{crosscoder_forward.2} parent=15 // pred_region
          %s189 = sand.u32 %s15, 1
          %s190 = scalar_lea.sflag [#allocation6], %s189
          %s191 = sand.u32 %s74, 1
          %s192 = smul.addr %s191, 256
          %s193 = scalar_lea.vmem [#allocation5], %s192
          %s194 = smul.u32 16, %s24
          %s195 = smul.u32 2, %s23
          %s197 = ssub.s32 4096, 4096
          %198 = vsyncadd %s190, %s197
          %s199 = smul.addr %s194, 4
          %s200 = sadd.s32 %s195, %s199
          %s201 = smul.addr %s200, 128
          %s202 = scalar_lea.hbm %s1, %s201
          %s203 = sshll.u32 %s193, 4
          %s204 = int_to_ptr.vmem [resolvable:$true] %s203
          %209 = dma.hbm_to_vmem [thread:$0]  %s202, 4096, %s204, %s190, 512, 256, 16
        $region24: #{crosscoder_forward.2} parent=15 // pred_fallthru
          _
        // Predicated region
        $region25: #{crosscoder_forward.2} parent=15 // pred_check
          %p210 = pneg %p110
        $region26: #{crosscoder_forward.2} parent=15 // pred_check_branch
          %212 = sbr.rel (%p210) target = $region28
        $region27: #{crosscoder_forward.2} parent=15 // pred_region
          %s213 = sand.u32 %s15, 1
          %s214 = scalar_lea.sflag [#allocation6], %s213
          %s215 = sand.u32 %s100, 1
          %s216 = smul.addr %s215, 2
          %s217 = scalar_lea.vmem [#allocation7], %s216
          %s218 = smul.u32 2, %s23
          %s220 = ssub.s32 32, 32
          %221 = vsyncadd %s214, %s220
          %s222 = smul.addr %s218, 16
          %s223 = scalar_lea.hbm %s2, %s222
          %s225 = sshll.u32 %s217, 4
          %s226 = int_to_ptr.vmem [resolvable:$true] %s225
          %228 = dma.hbm_to_vmem [thread:$0]  %s223, 32, %s226, %s214
        $region28: #{crosscoder_forward.2} parent=15 // pred_fallthru
          _
      $region16: #{crosscoder_forward.2} parent=5 // pred_fallthru
        _
      %p229 = scmp.le.s32.totalorder 1, %s15
      %p230 = scmp.lt.s32.totalorder %s15, 13
      %p231 = pnand %p229, %p230
      %p232 = pneg %p231
      // Predicated region
      $region29: #{crosscoder_forward.2} parent=5 // pred_check
        _
      $region30: #{crosscoder_forward.2} parent=5 // pred_check_branch
        %234 = sbr.rel (%p231) target = $region32
      $region31: #{crosscoder_forward.2} parent=5 // pred_region
        %s235 = ssub.s32 %s15, 1
        %s236 = sand.u32 %s49, 1
        %s237 = scalar_lea.sflag [#allocation4], %s236
        %s238 = sand.u32 %s49, 1
        %s239 = smul.addr %s238, 16
        %s240 = scalar_lea.vmem [#allocation3], %s239
        // Predicated region
        $region33: #{crosscoder_forward.2} parent=31 // pred_check
          %p241 = pneg %p62
        $region34: #{crosscoder_forward.2} parent=31 // pred_check_branch
          %243 = sbr.rel (%p241) target = $region36
        $region35: #{crosscoder_forward.2} parent=31 // pred_region
          %244 = dma.done %s237, 256
        $region36: #{crosscoder_forward.2} parent=31 // pred_fallthru
          _
        %s245 = sand.u32 %s20, 1
        %s246 = scalar_lea.sflag [#allocation6], %s245
        %s247 = sand.u32 %s77, 1
        %s248 = smul.addr %s247, 256
        %s249 = scalar_lea.vmem [#allocation5], %s248
        // Predicated region
        $region37: #{crosscoder_forward.2} parent=31 // pred_check
          %p250 = pneg %p90
        $region38: #{crosscoder_forward.2} parent=31 // pred_check_branch
          %252 = sbr.rel (%p250) target = $region40
        $region39: #{crosscoder_forward.2} parent=31 // pred_region
          %253 = dma.done %s246, 4096
        $region40: #{crosscoder_forward.2} parent=31 // pred_fallthru
          _
        %s254 = sand.u32 %s20, 1
        %s255 = scalar_lea.sflag [#allocation6], %s254
        %s256 = sand.u32 %s103, 1
        %s257 = smul.addr %s256, 2
        %s258 = scalar_lea.vmem [#allocation7], %s257
        // Predicated region
        $region41: #{crosscoder_forward.2} parent=31 // pred_check
          %p259 = pneg %p116
        $region42: #{crosscoder_forward.2} parent=31 // pred_check_branch
          %261 = sbr.rel (%p259) target = $region44
        $region43: #{crosscoder_forward.2} parent=31 // pred_region
          %262 = dma.done %s255, 32
        $region44: #{crosscoder_forward.2} parent=31 // pred_fallthru
          _
        %s263 = sand.u32 %s49, 1
        %s264 = scalar_lea.sflag [#allocation4], %s263
        %s265 = sand.u32 %s49, 1
        %s266 = smul.addr %s265, 16
        %s267 = scalar_lea.vmem [#allocation3], %s266
        %p268 = pneg %p62
        %p269 = pneg %p59
        %s270 = sand.u32 %s20, 1
        %s271 = scalar_lea.sflag [#allocation6], %s270
        %s272 = sand.u32 %s77, 1
        %s273 = smul.addr %s272, 256
        %s274 = scalar_lea.vmem [#allocation5], %s273
        %p275 = pneg %p90
        %p276 = pneg %p87
        %s277 = sand.u32 %s20, 1
        %s278 = scalar_lea.sflag [#allocation6], %s277
        %s279 = sand.u32 %s103, 1
        %s280 = smul.addr %s279, 2
        %s281 = scalar_lea.vmem [#allocation7], %s280
        %p282 = pneg %p116
        %p283 = pneg %p113
        %p284 = pneg %p144
        %p285 = pneg %p141
        %s286 = sand.u32 %s131, 1
        %s287 = sand.u32 %s131, 1
        %s288 = smul.addr %s287, 32
        %s289 = scalar_lea.vmem [#allocation8], %s288
        %s290 = smul.u32 2, %s25
        %s291 = smul.u32 16, %s27
        %s292 = smul.u32 2, %s26
        %s293 = smul.u32 2, %s26
        %s294 = smul.u32 2, %s25
        %s295 = smul.u32 2, %s26
        %p296 = scmp.eq.s32.totalorder %s27, 0
        // Predicated region
        $region45: #{crosscoder_forward.2} parent=31 // pred_check
          %p297 = pneg %p296
        $region46: #{crosscoder_forward.2} parent=31 // pred_check_branch
          %299 = sbr.rel (%p297) target = $region48
        $region47: #{crosscoder_forward.2} parent=31 // pred_region
          %300 = vst [vmem:[#allocation2] sm:$0xff] 0.0
          %301 = vst [vmem:[#allocation2 + $0x8] sm:$0xff] 0.0
          %302 = vst [vmem:[#allocation2 + $0x10] sm:$0xff] 0.0
          %303 = vst [vmem:[#allocation2 + $0x18] sm:$0xff] 0.0
        $region48: #{crosscoder_forward.2} parent=31 // pred_fallthru
          _
        %v304 = vld [vmem:[#allocation2] sm:$0xff]
        %v305 = vld [vmem:[#allocation2 + $0x8] sm:$0xff]
        %v306 = vld [vmem:[#allocation2 + $0x10] sm:$0xff]
        %v307 = vld [vmem:[#allocation2 + $0x18] sm:$0xff]
        %v308 = vld [vmem:[%s240] sm:$0xff]
        %v309 = vld [vmem:[%s240 + $0x8] sm:$0xff]
        %v310 = vld [vmem:[%s249] sm:$0xff]
        %v311 = vld [vmem:[%s249 + $0x8] sm:$0xff]
        %v312 = vld [vmem:[%s249 + $0x10] sm:$0xff]
        %v313 = vld [vmem:[%s249 + $0x18] sm:$0xff]
        %v314 = vld [vmem:[%s249 + $0x20] sm:$0xff]
        %v315 = vld [vmem:[%s249 + $0x28] sm:$0xff]
        %v316 = vld [vmem:[%s249 + $0x30] sm:$0xff]
        %v317 = vld [vmem:[%s249 + $0x38] sm:$0xff]
        %v318 = vld [vmem:[%s249 + $0x40] sm:$0xff]
        %v319 = vld [vmem:[%s249 + $0x48] sm:$0xff]
        %v320 = vld [vmem:[%s249 + $0x50] sm:$0xff]
        %v321 = vld [vmem:[%s249 + $0x58] sm:$0xff]
        %v322 = vld [vmem:[%s249 + $0x60] sm:$0xff]
        %v323 = vld [vmem:[%s249 + $0x68] sm:$0xff]
        %v324 = vld [vmem:[%s249 + $0x70] sm:$0xff]
        %v325 = vld [vmem:[%s249 + $0x78] sm:$0xff]
        %v326 = vld [vmem:[%s249 + $0x80] sm:$0xff]
        %v327 = vld [vmem:[%s249 + $0x88] sm:$0xff]
        %v328 = vld [vmem:[%s249 + $0x90] sm:$0xff]
        %v329 = vld [vmem:[%s249 + $0x98] sm:$0xff]
        %v330 = vld [vmem:[%s249 + $0xa0] sm:$0xff]
        %v331 = vld [vmem:[%s249 + $0xa8] sm:$0xff]
        %v332 = vld [vmem:[%s249 + $0xb0] sm:$0xff]
        %v333 = vld [vmem:[%s249 + $0xb8] sm:$0xff]
        %v334 = vld [vmem:[%s249 + $0xc0] sm:$0xff]
        %v335 = vld [vmem:[%s249 + $0xc8] sm:$0xff]
        %v336 = vld [vmem:[%s249 + $0xd0] sm:$0xff]
        %v337 = vld [vmem:[%s249 + $0xd8] sm:$0xff]
        %v338 = vld [vmem:[%s249 + $0xe0] sm:$0xff]
        %v339 = vld [vmem:[%s249 + $0xe8] sm:$0xff]
        %v340 = vld [vmem:[%s249 + $0xf0] sm:$0xff]
        %v341 = vld [vmem:[%s249 + $0xf8] sm:$0xff]
        %342 = vmatprep.subr.mxu0 %v341
        %343 = vmatpush1.msra.mxu0 %v340
        %344 = vmatprep.subr.mxu0 %v339
        %345 = vmatpush1.msra.mxu0 %v338
        %346 = vmatprep.subr.mxu0 %v337
        %347 = vmatpush1.msra.mxu0 %v336
        %348 = vmatprep.subr.mxu0 %v335
        %349 = vmatpush1.msra.mxu0 %v334
        %350 = vmatprep.subr.mxu0 %v333
        %351 = vmatpush1.msra.mxu0 %v332
        %352 = vmatprep.subr.mxu0 %v331
        %353 = vmatpush1.msra.mxu0 %v330
        %354 = vmatprep.subr.mxu0 %v329
        %355 = vmatpush1.msra.mxu0 %v328
        %356 = vmatprep.subr.mxu0 %v327
        %357 = vmatpush1.msra.mxu0 %v326
        %358 = vmatprep.subr.mxu0 %v325
        %359 = vmatpush1.msra.mxu0 %v324
        %360 = vmatprep.subr.mxu0 %v323
        %361 = vmatpush1.msra.mxu0 %v322
        %362 = vmatprep.subr.mxu0 %v321
        %363 = vmatpush1.msra.mxu0 %v320
        %364 = vmatprep.subr.mxu0 %v319
        %365 = vmatpush1.msra.mxu0 %v318
        %366 = vmatprep.subr.mxu0 %v317
        %367 = vmatpush1.msra.mxu0 %v316
        %368 = vmatprep.subr.mxu0 %v315
        %369 = vmatpush1.msra.mxu0 %v314
        %370 = vmatprep.subr.mxu0 %v313
        %371 = vmatpush1.msra.mxu0 %v312
        %372 = vmatprep.subr.mxu0 %v311
        %373 = vmatpush1.msra.mxu0 %v310
        %374 = vmatprep.subr.mxu0 0.0
        %375 = vmatpush2.msra.mxu0 0.0
        %376 = vmatprep.subr.mxu0 0.0
        %377 = vmatpush2.msra.mxu0 0.0
        %378 = vmatprep.subr.mxu0 0.0
        %379 = vmatpush2.msra.mxu0 0.0
        %380 = vmatprep.subr.mxu0 0.0
        %381 = vmatpush2.msra.mxu0 0.0
        %382 = vmatprep.subr.mxu0 0.0
        %383 = vmatpush2.msra.mxu0 0.0
        %384 = vmatprep.subr.mxu0 0.0
        %385 = vmatpush2.msra.mxu0 0.0
        %386 = vmatprep.subr.mxu0 0.0
        %387 = vmatpush2.msra.mxu0 0.0
        %388 = vmatprep.subr.mxu0 0.0
        %389 = vmatpush2.msra.mxu0 0.0
        %390 = vmatprep.subr.mxu0 0.0
        %391 = vmatpush2.msra.mxu0 0.0
        %392 = vmatprep.subr.mxu0 0.0
        %393 = vmatpush2.msra.mxu0 0.0
        %394 = vmatprep.subr.mxu0 0.0
        %395 = vmatpush2.msra.mxu0 0.0
        %396 = vmatprep.subr.mxu0 0.0
        %397 = vmatpush2.msra.mxu0 0.0
        %398 = vmatprep.subr.mxu0 0.0
        %399 = vmatpush2.msra.mxu0 0.0
        %400 = vmatprep.subr.mxu0 0.0
        %401 = vmatpush2.msra.mxu0 0.0
        %402 = vmatprep.subr.mxu0 0.0
        %403 = vmatpush2.msra.mxu0 0.0
        %404 = vmatprep.subr.mxu0 0.0
        %405 = vmatpush2.msra.mxu0 0.0
        %406 = vmatprep.mubr.f32.mxu0 0.0
        %407 = vmatmul.mubr.f32.gmra.mxu0 %v308
        %v408 = vpop.f32.mrf.mxu0
        %v409 = vadd.f32 0.0, %v408
        %v410 = vpop.f32.mrf.mxu0
        %v411 = vadd.f32 0.0, %v410
        %412 = vmatprep.mubr.f32.mxu0 0.0
        %413 = vmatmul.mubr.f32.gmra.mxu0 %v309
        %v414 = vpop.f32.mrf.mxu0
        %v415 = vadd.f32 0.0, %v414
        %v416 = vpop.f32.mrf.mxu0
        %v417 = vadd.f32 0.0, %v416
        %418 = vdwg.mxu0
        %v419 = vadd.f32 %v304, %v409
        %v420 = vadd.f32 %v305, %v411
        %v421 = vadd.f32 %v306, %v415
        %v422 = vadd.f32 %v307, %v417
        %423 = vst [vmem:[#allocation2] sm:$0xff] %v419
        %424 = vst [vmem:[#allocation2 + $0x8] sm:$0xff] %v420
        %425 = vst [vmem:[#allocation2 + $0x10] sm:$0xff] %v421
        %426 = vst [vmem:[#allocation2 + $0x18] sm:$0xff] %v422
        %p427 = scmp.eq.s32.totalorder %s27, 1
        // Predicated region
        $region49: #{crosscoder_forward.2} parent=31 // pred_check
          %p428 = pneg %p427
        $region50: #{crosscoder_forward.2} parent=31 // pred_check_branch
          %430 = sbr.rel (%p428) target = $region52
        $region51: #{crosscoder_forward.2} parent=31 // pred_region
          %v431 = vld [vmem:[#allocation2] sm:$0xff]
          %v432 = vld [vmem:[#allocation2 + $0x8] sm:$0xff]
          %v433 = vld [vmem:[#allocation2 + $0x10] sm:$0xff]
          %v434 = vld [vmem:[#allocation2 + $0x18] sm:$0xff]
          %v435 = vld [vmem:[%s258] sm:$0x3]
          %v437 = vlaneseq
          %v438 = vshrl.u32 %v437, 7
          %v439 = vsub.s32 0, %v438
          %v440 = vrot.slane %v435, %v439
          %v441 = vlaneseq
          %v442 = vshrl.u32 %v441, 7
          %v443 = vsub.s32 1, %v442
          %v444 = vrot.slane %v435, %v443
          %v447 = vadd.f32 %v431, %v440
          %v448 = vadd.f32 %v432, %v444
          %v449 = vadd.f32 %v433, %v440
          %v450 = vadd.f32 %v434, %v444
          %v451 = vmax.f32 %v447, 0.0
          %v452 = vmax.f32 %v448, 0.0
          %v453 = vmax.f32 %v449, 0.0
          %v454 = vmax.f32 %v450, 0.0
          %455 = vst [vmem:[%s289] sm:$0xff] %v451
          %456 = vst [vmem:[%s289 + $0x8] sm:$0xff] %v452
          %457 = vst [vmem:[%s289 + $0x10] sm:$0xff] %v453
          %458 = vst [vmem:[%s289 + $0x18] sm:$0xff] %v454
        $region52: #{crosscoder_forward.2} parent=31 // pred_fallthru
          _
        %s459 = sand.u32 %s131, 1
        %s460 = sand.u32 %s131, 1
        %s461 = smul.addr %s460, 32
        %s462 = scalar_lea.vmem [#allocation8], %s461
        // Predicated region
        $region53: #{crosscoder_forward.2} parent=31 // pred_check
          %p463 = pneg %p141
        $region54: #{crosscoder_forward.2} parent=31 // pred_check_branch
          %465 = sbr.rel (%p463) target = $region56
        $region55: #{crosscoder_forward.2} parent=31 // pred_region
          %s466 = smul.u32 2, %s25
          %s467 = smul.u32 2, %s26
          %s468 = smul.addr %s466, 4
          %s469 = sadd.s32 %s467, %s468
          %s470 = smul.addr %s469, 8
          %s471 = scalar_lea.vmem %s3, %s470
          // Predicated region
          $region57: #{crosscoder_forward.2} parent=55 // pred_check
            _
          $region58: #{crosscoder_forward.2} parent=55 // pred_check_branch
            %473 = sbr.rel (0) target = $region60
          $region59: #{crosscoder_forward.2} parent=55 // pred_region
            // Predicated region
            $region61: #{crosscoder_forward.2} parent=59 // pred_check
              _
            $region62: #{crosscoder_forward.2} parent=59 // pred_check_branch
              %475 = sbr.rel (0) target = $region64
            $region63: #{crosscoder_forward.2} parent=59 // pred_region
              loop: start=0, step=1, limit=1
              $region65: #{crosscoder_forward.2} parent=63 // loop_pre_header
                _
              $region66: #{crosscoder_forward.2} parent=63 // loop_header
                %s477 = sphi 0, %s481
                %p478 = scmp.ge.s32.totalorder %s477, 1
                %s482 = sphi %s462, %s462
                %s483 = sphi %s471, %s471
              $region67: #{crosscoder_forward.2} parent=63 // loop_header_branch
                %480 = sbr.rel (%p478) target = $region71
              $region68: #{crosscoder_forward.2} parent=63 // loop_body
                %v484 = vld [vmem:[%s482] sm:$0xff]
                %485 = vst [vmem:[%s483] sm:$0xff] %v484
                %v486 = vld [vmem:[%s482 + $0x8] sm:$0xff]
                %487 = vst [vmem:[%s483 + $0x8] sm:$0xff] %v486
                %v488 = vld [vmem:[%s482 + $0x10] sm:$0xff]
                %489 = vst [vmem:[%s483 + $0x20] sm:$0xff] %v488
                %v490 = vld [vmem:[%s482 + $0x18] sm:$0xff]
                %491 = vst [vmem:[%s483 + $0x28] sm:$0xff] %v490
              $region69: #{crosscoder_forward.2} parent=63 // loop_footer
                %s481 = sadd.s32 1, %s477
              $region70: #{crosscoder_forward.2} parent=63 // loop_footer_branch
                %476 = sbr.rel target = $region66
              $region71: #{crosscoder_forward.2} parent=63 // loop_exit
                _
            $region64: #{crosscoder_forward.2} parent=59 // pred_fallthru
              _
            // Predicated region
            $region72: #{crosscoder_forward.2} parent=59 // pred_check
              _
            $region73: #{crosscoder_forward.2} parent=59 // pred_check_branch
              %493 = sbr.rel target = $region75
            $region74: #{crosscoder_forward.2} parent=59 // pred_region
              _
            $region75: #{crosscoder_forward.2} parent=59 // pred_fallthru
              _
          $region60: #{crosscoder_forward.2} parent=55 // pred_fallthru
            _
          %494 = vnop
        $region56: #{crosscoder_forward.2} parent=31 // pred_fallthru
          _
      $region32: #{crosscoder_forward.2} parent=5 // pred_fallthru
        _
      %p495 = scmp.le.s32.totalorder 2, %s15
      // Predicated region
      $region76: #{crosscoder_forward.2} parent=5 // pred_check
        %p496 = pneg %p495
      $region77: #{crosscoder_forward.2} parent=5 // pred_check_branch
        %498 = sbr.rel (%p496) target = $region79
      $region78: #{crosscoder_forward.2} parent=5 // pred_region
        %s499 = ssub.s32 %s15, 2
        // Predicated region
        $region80: #{crosscoder_forward.2} parent=78 // pred_check
          %p500 = pneg %p147
        $region81: #{crosscoder_forward.2} parent=78 // pred_check_branch
          %502 = sbr.rel (%p500) target = $region83
        $region82: #{crosscoder_forward.2} parent=78 // pred_region
          %s503 = sand.u32 %s132, 1
          %s504 = sand.u32 %s132, 1
          %s505 = smul.addr %s504, 32
          %s506 = scalar_lea.vmem [#allocation8], %s505
        $region83: #{crosscoder_forward.2} parent=78 // pred_fallthru
          _
      $region79: #{crosscoder_forward.2} parent=5 // pred_fallthru
        _
    $region6: #{crosscoder_forward.2} parent=1 // loop_footer
      %s19 = sadd.s32 1, %s15
    $region7: #{crosscoder_forward.2} parent=1 // loop_footer_branch
      %14 = sbr.rel target = $region3
    $region8: #{crosscoder_forward.2} parent=1 // loop_exit
      _
    %507 = vsyncpa [#allocation4], 1
    %s508 = scalar_lea.sflag [#allocation4], 1
    %509 = vsyncpa %s508, 1
    %510 = vsyncpa [#allocation6], 1
    %s511 = scalar_lea.sflag [#allocation6], 1
    %512 = vsyncpa %s511, 1

</llo_original>
